<compile_context>
chip_gen: v7x
topology: tpu7x:2x2x1
jax: 0.10.0
libtpu: 0.0.40
codegen_flags: <defaults>
</compile_context>

<pallas_src>
import functools

import jax
import jax.numpy as jnp
from jax.experimental import pallas as pl
from jax.experimental.pallas import tpu as pltpu

EPS = 1e-7  # module default (torch InstanceNorm2d default is 1e-5; this module passes 1e-7)

_LANE = 128


def _ceil_div(a, b):
    return -(-a // b)


def _round_up(x, m):
    return _ceil_div(x, m) * m


def _sublane(dtype) -> int:
    # f32 -> 8, bf16/f16 -> 16, int8/fp8 -> 32 (sub-32-bit dtypes pack along sublanes).
    return 8 * max(1, 4 // jnp.dtype(dtype).itemsize)


def _tpu_vmem_capacity() -> int:
    try:
        return int(pltpu.get_tpu_info().vmem_capacity_bytes)
    except Exception:
        return 64 * 1024 * 1024  # conservative fallback (v7x per-TC VMEM)


# ---------------------------------------------------------------------------
# Path 1: whole spatial extent per block (small/medium H*W).
# Block = (r_tile rows, HW lanes); exact centered mean/variance per row.
# ---------------------------------------------------------------------------
def _norm_rows_kernel(x_ref, o_ref, *, inv_n):
    x = x_ref[...].astype(jnp.float32)                          # (r_tile, HW)
    mean = jnp.sum(x, axis=-1, keepdims=True) * inv_n           # (r_tile, 1)
    c = x - mean
    var = jnp.sum(c * c, axis=-1, keepdims=True) * inv_n        # biased variance
    o_ref[...] = (c * jax.lax.rsqrt(var + EPS)).astype(o_ref.dtype)


# ---------------------------------------------------------------------------
# Path 2 (very large H*W): two-phase.
#   Phase A: accumulate per-row sum / sumsq across lane tiles (reduction axis last),
#            masking the column tail in-kernel (no HBM padding copy).
#   Phase B: re-read x tiles and normalize using the per-row stats.
# ---------------------------------------------------------------------------
def _stats_kernel(x_ref, sum_ref, sq_ref, *, hw, hw_tile, mask_tail):
    k = pl.program_id(1)

    @pl.when(k == 0)
    def _():
        sum_ref[...] = jnp.zeros_like(sum_ref)
        sq_ref[...] = jnp.zeros_like(sq_ref)

    x = x_ref[...].astype(jnp.float32)                          # (r_tile, hw_tile)
    if mask_tail:
        col = jax.lax.broadcasted_iota(jnp.int32, x.shape, 1) + k * hw_tile
        x = jnp.where(col < hw, x, 0.0)
    sum_ref[...] += jnp.sum(x, axis=-1, keepdims=True)
    sq_ref[...] += jnp.sum(x * x, axis=-1, keepdims=True)


def _apply_kernel(x_ref, sum_ref, sq_ref, o_ref, *, inv_n):
    x = x_ref[...].astype(jnp.float32)                          # (r_tile, hw_tile)
    mean = sum_ref[...] * inv_n                                 # (r_tile, 1)
    var = jnp.maximum(sq_ref[...] * inv_n - mean * mean, 0.0)
    o_ref[...] = ((x - mean) * jax.lax.rsqrt(var + EPS)).astype(o_ref.dtype)


# ---------------------------------------------------------------------------
# Wrapper
# ---------------------------------------------------------------------------
def per_image_normalize(x: jnp.ndarray, *, max_block_bytes: int | None = None) -> jnp.ndarray:
    """Per-channel (per image) spatial normalization.

    x: (C, H, W) -- the module's literal signature -- or (N, C, H, W) to batch
       many images per pallas_call. Each (image, channel) plane is normalized
       independently over H*W with biased variance and eps=1e-7.
    """
    orig_shape = x.shape
    if x.ndim == 3:
        C, H, W = x.shape
        R = C
    elif x.ndim == 4:
        N, C, H, W = x.shape
        R = N * C
    else:
        raise ValueError(f"expected (C,H,W) or (N,C,H,W), got {x.shape}")

    HW = H * W
    inv_n = 1.0 / float(HW)
    x2d = x.reshape(R, HW)

    itemsize = x.dtype.itemsize
    sub = _sublane(x.dtype)

    vmem_cap = _tpu_vmem_capacity()
    usable = max(32 * 1024 * 1024, (vmem_cap * 3) // 4)         # leave compiler scratch headroom
    if max_block_bytes is None:
        max_block_bytes = max(2 * 1024 * 1024, vmem_cap // 16)  # ~4 MiB v7x, ~8 MiB v5e/v6e

    bytes_per_row = HW * itemsize
    # Per-row VMEM footprint on the single-pass path:
    #   2x double-buffered input + 2x double-buffered output + ~3 f32 block temporaries.
    row_cost = 4 * bytes_per_row + 3 * HW * 4

    single_pass = sub * row_cost <= min(usable, 8 * max_block_bytes)

    if single_pass:
        # -------- single-pass: one lane-dense (r_tile, HW) block per grid step --------
        r_tile = min(
            max(usable // row_cost, sub),                       # fits VMEM (dbuf + temps)
            max(max_block_bytes // max(bytes_per_row, 1), sub), # keep HBM block ~max_block_bytes
            max(_round_up(_ceil_div(R, 4), sub), sub),          # >=4 grid steps when possible
        )
        if r_tile >= R:
            r_tile = R                                          # full dim -> always a legal block
        else:
            r_tile = max((r_tile // sub) * sub, sub)            # partial last block handled by cdiv grid

        need = r_tile * row_cost + (2 << 20)
        out2d = pl.pallas_call(
            functools.partial(_norm_rows_kernel, inv_n=inv_n),
            out_shape=jax.ShapeDtypeStruct((R, HW), x.dtype),
            grid_spec=pltpu.PrefetchScalarGridSpec(
                num_scalar_prefetch=0,
                grid=(_ceil_div(R, r_tile),),
                in_specs=[pl.BlockSpec((r_tile, HW), lambda i: (i, 0))],
                out_specs=pl.BlockSpec((r_tile, HW), lambda i: (i, 0)),
            ),
            compiler_params=pltpu.CompilerParams(
                dimension_semantics=("parallel",),
                vmem_limit_bytes=int(min(usable, max(4 << 20, need))),
            ),
        )(x2d)
    else:
        # -------- two-phase: tiled reduction + tiled normalize --------
        r_tile = _round_up(64, sub)                             # 64 rows: TC sharding + fewer stats DMAs
        if r_tile >= R:
            r_tile = R                                          # full dim -> always legal

        hw_budget = max(((max_block_bytes // max(r_tile * itemsize, 1)) // _LANE) * _LANE, _LANE)
        if hw_budget >= HW:
            hw_tile = HW
        else:
            n_k = _ceil_div(HW, hw_budget)
            hw_tile = _round_up(_ceil_div(HW, n_k), _LANE)      # balanced tiles: tail waste < 128 lanes
            if hw_tile >= HW:
                hw_tile = HW
        mask_tail = (HW % hw_tile) != 0

        grid = (_ceil_div(R, r_tile), _ceil_div(HW, hw_tile))
        stats_shape = jax.ShapeDtypeStruct((R, 1), jnp.float32)

        block_in = r_tile * hw_tile * itemsize
        need = 4 * block_in + 3 * r_tile * hw_tile * 4 + (2 << 20)
        vmem_limit = int(min(usable, max(4 << 20, need)))

        row_sum, row_sq = pl.pallas_call(
            functools.partial(_stats_kernel, hw=HW, hw_tile=hw_tile, mask_tail=mask_tail),
            out_shape=(stats_shape, stats_shape),
            grid_spec=pltpu.PrefetchScalarGridSpec(
                num_scalar_prefetch=0,
                grid=grid,
                in_specs=[pl.BlockSpec((r_tile, hw_tile), lambda i, k: (i, k))],
                out_specs=(
                    pl.BlockSpec((r_tile, 1), lambda i, k: (i, 0)),
                    pl.BlockSpec((r_tile, 1), lambda i, k: (i, 0)),
                ),
            ),
            compiler_params=pltpu.CompilerParams(
                dimension_semantics=("parallel", "arbitrary"),
                vmem_limit_bytes=vmem_limit,
            ),
        )(x2d)

        out2d = pl.pallas_call(
            functools.partial(_apply_kernel, inv_n=inv_n),
            out_shape=jax.ShapeDtypeStruct((R, HW), x.dtype),
            grid_spec=pltpu.PrefetchScalarGridSpec(
                num_scalar_prefetch=0,
                grid=grid,
                in_specs=[
                    pl.BlockSpec((r_tile, hw_tile), lambda i, k: (i, k)),
                    pl.BlockSpec((r_tile, 1), lambda i, k: (i, 0)),
                    pl.BlockSpec((r_tile, 1), lambda i, k: (i, 0)),
                ],
                out_specs=pl.BlockSpec((r_tile, hw_tile), lambda i, k: (i, k)),
            ),
            compiler_params=pltpu.CompilerParams(
                dimension_semantics=("parallel", "parallel"),
                vmem_limit_bytes=vmem_limit,
            ),
        )(x2d, row_sum, row_sq)

    return out2d.reshape(orig_shape)


# ---------------------------------------------------------------------------
# Pure-JAX reference (InstanceNorm2d, biased variance)
# ---------------------------------------------------------------------------
def _reference(x: jnp.ndarray) -> jnp.ndarray:
    axes = (x.ndim - 2, x.ndim - 1)
    mean = jnp.mean(x, axis=axes, keepdims=True)
    var = jnp.mean((x - mean) ** 2, axis=axes, keepdims=True)
    return (x - mean) / jnp.sqrt(var + EPS)


if __name__ == "__main__":
    key = jax.random.PRNGKey(0)
    k1, k2, k3 = jax.random.split(key, 3)

    # Batched use (amortizes the pallas_call over many images): (N, C, H, W)
    xb = jax.random.normal(k1, (2, 4, 16, 16), dtype=jnp.float32) * 3.0 + 1.5
    yb = jax.block_until_ready(per_image_normalize(xb))
    assert yb.shape == xb.shape and yb.dtype == xb.dtype
    assert jnp.allclose(yb, _reference(xb), atol=1e-5, rtol=1e-5), "batched mismatch"

    # Module's literal signature: single image (C, H, W), C not a multiple of 8
    # (no HBM padding copy: full-dim block, partial rows handled by the grid).
    xs = jax.random.normal(k2, (3, 16, 24), dtype=jnp.float32) * 2.0 - 0.5
    ys = jax.block_until_ready(per_image_normalize(xs))
    assert ys.shape == xs.shape and ys.dtype == xs.dtype
    assert jnp.allclose(ys, _reference(xs), atol=1e-5, rtol=1e-5), "single-image mismatch"

    # Exercise the two-phase (tiled-reduction) path by shrinking the block budget
    xl = jax.random.normal(k3, (2, 4, 64, 64), dtype=jnp.float32) * 1.7 + 0.3
    yl = jax.block_until_ready(per_image_normalize(xl, max_block_bytes=64 * 1024))
    assert jnp.allclose(yl, _reference(xl), atol=1e-5, rtol=1e-5), "two-phase mismatch"

    print("KERNEL_OK")
</pallas_src>

<mosaic_0001>
module attributes {stable_mosaic.version = 11 : i64} {
  func.func @_norm_rows_kernel(%arg0: i32, %arg1: memref<8x256xf32, #tpu.memory_space<vmem>>, %arg2: memref<8x256xf32, #tpu.memory_space<vmem>>) attributes {dimension_semantics = [#tpu.dimension_semantics<parallel>], iteration_bounds = array<i64: 1>, scalar_prefetch = 0 : i64, scratch_operands = 0 : i64, tpu.core_type = #tpu.core_type<tc>, window_params = [{transform_indices = @transform_0, window_bounds = array<i64: 8, 256>}, {transform_indices = @transform_1, window_bounds = array<i64: 8, 256>}]} {
    %c0 = arith.constant 0 : index
    %c0_0 = arith.constant 0 : index
    %0 = vector.load %arg1[%c0, %c0_0] : memref<8x256xf32, #tpu.memory_space<vmem>>, vector<8x256xf32>
    %cst = arith.constant dense<0.000000e+00> : vector<8xf32>
    %1 = vector.multi_reduction <add>, %0, %cst [1] : vector<8x256xf32> to vector<8xf32>
    %2 = vector.shape_cast %1 : vector<8xf32> to vector<8x1xf32>
    %cst_1 = arith.constant 3.906250e-03 : f32
    %3 = vector.broadcast %cst_1 : f32 to vector<8x1xf32>
    %4 = arith.mulf %2, %3 : vector<8x1xf32>
    %5 = vector.broadcast %4 : vector<8x1xf32> to vector<8x256xf32>
    %6 = arith.subf %0, %5 : vector<8x256xf32>
    %7 = arith.mulf %6, %6 : vector<8x256xf32>
    %cst_2 = arith.constant dense<0.000000e+00> : vector<8xf32>
    %8 = vector.multi_reduction <add>, %7, %cst_2 [1] : vector<8x256xf32> to vector<8xf32>
    %9 = vector.shape_cast %8 : vector<8xf32> to vector<8x1xf32>
    %cst_3 = arith.constant 3.906250e-03 : f32
    %10 = vector.broadcast %cst_3 : f32 to vector<8x1xf32>
    %11 = arith.mulf %9, %10 : vector<8x1xf32>
    %cst_4 = arith.constant 1.000000e-07 : f32
    %12 = vector.broadcast %cst_4 : f32 to vector<8x1xf32>
    %13 = arith.addf %11, %12 : vector<8x1xf32>
    %14 = math.rsqrt %13 : vector<8x1xf32>
    %15 = vector.broadcast %14 : vector<8x1xf32> to vector<8x256xf32>
    %16 = arith.mulf %6, %15 : vector<8x256xf32>
    %c0_5 = arith.constant 0 : index
    %c0_6 = arith.constant 0 : index
    %17 = vector.load %arg2[%c0_5, %c0_6] : memref<8x256xf32, #tpu.memory_space<vmem>>, vector<8x256xf32>
    tpu.vector_store %arg2[%c0_5, %c0_6], %16 {strides = array<i32>} : memref<8x256xf32, #tpu.memory_space<vmem>>, vector<8x256xf32>,
    return
  }
  func.func @transform_0(%arg0: i32) -> (i32, i32) {
    %c0_i32 = arith.constant 0 : i32
    %c0_i32_0 = arith.constant 0 : i32
    return %arg0, %c0_i32 : i32, i32
  }
  func.func @transform_1(%arg0: i32) -> (i32, i32) {
    %c0_i32 = arith.constant 0 : i32
    %c0_i32_0 = arith.constant 0 : i32
    return %arg0, %c0_i32 : i32, i32
  }
}

</mosaic_0001>

<llo_original>
// kernel: tpu_custom_call.1
$region0: #{tpu_custom_call.1}
  #allocation0 [shape = 'u32[]', space=smem, size = 0x4, offset = 0x4, fixed_abs, tag = 'smem constant byte address 0x4 - core index']
  #allocation1 [shape = 'u32[144,128]{1,0:T(1,128)}', space=vmem, size = 0x12000, scoped, tag = 'internal scratch']
  %s0 = inlined_call_operand.hbm [shape: f32[8,256], index: 0, kind: input, shape index: {}]
  %s1 = inlined_call_operand.hbm [shape: f32[8,256], index: 1, kind: output, shape index: {}]
  %s2 = sld [smem:[#allocation0]]
  $region18: #{tpu_custom_call.1} parent=0
    _
  %s4 = ssub.s32 1, %s2
  %s5 = scalar_select 0, %s4, %s2
  $region1: #{tpu_custom_call.1} parent=0
    #allocation2 [shape = 'u8[8192]{0}', space=vmem, size = 0x2000, scoped, tag = 'input window, operand 0, single buffered']
    #allocation3 [shape = 's32[1]{0}', space=sflag, size = 0x4, scoped, tag = 'scoped memory for tpu_custom_call.1']
    #allocation4 [shape = 's32[1]{0}', space=sflag, size = 0x4, scoped, tag = 'scoped memory for tpu_custom_call.1']
    #allocation5 [shape = 'u8[8192]{0}', space=vmem, size = 0x2000, scoped, tag = 'output window, operand 0, single buffered']
    %6 = vsyncpa [#allocation3], 0
    %7 = vsyncpa [#allocation4], 0
    // Predicated region
    $region2: #{tpu_custom_call.1} parent=1 // pred_check
      _
    $region3: #{tpu_custom_call.1} parent=1 // pred_check_branch
      %9 = sbr.rel (0) target = $region5
    $region4: #{tpu_custom_call.1} parent=1 // pred_region
      %s11 = ssub.s32 256, 256
      %12 = vsyncadd [#allocation3], %s11
      %s14 = sshll.u32 [#allocation2], 4
      %s15 = int_to_ptr.vmem [resolvable:$true] %s14
      %17 = dma.hbm_to_vmem [thread:$0]  %s0, 256, %s15, [#allocation3]
    $region5: #{tpu_custom_call.1} parent=1 // pred_fallthru
      _
    // Predicated region
    $region6: #{tpu_custom_call.1} parent=1 // pred_check
      _
    $region7: #{tpu_custom_call.1} parent=1 // pred_check_branch
      %19 = sbr.rel (0) target = $region9
    $region8: #{tpu_custom_call.1} parent=1 // pred_region
      %20 = dma.done [#allocation3], 256
    $region9: #{tpu_custom_call.1} parent=1 // pred_fallthru
      _
    %v21 = vld [vmem:[#allocation2] sm:$0xff]
    %v22 = vld [vmem:[#allocation2 + $0x8] sm:$0xff]
    %v23 = vadd.f32 %v21, %v22
    %24 = vadd.xlane.f32.xlu0 %v23
    %v25 = vpop.xlane.xlu0 %24
    %v26 = vmul.f32 %v25, 0.00390625
    %v27 = vsub.f32 %v21, %v26
    %v28 = vsub.f32 %v22, %v26
    %v29 = vmul.f32 %v27, %v27
    %v30 = vmul.f32 %v28, %v28
    %v31 = vadd.f32 %v29, %v30
    %32 = vadd.xlane.f32.xlu0 %v31
    %v33 = vpop.xlane.xlu0 %32
    %v34 = vmul.f32 %v33, 0.00390625
    %v35 = vadd.f32 %v34, 1e-07
    %v36 = vrsqrt.pop %v35
    %v37 = vmul.f32 %v27, %v36
    %v38 = vmul.f32 %v28, %v36
    %39 = vst [vmem:[#allocation5] sm:$0xff] %v37
    %40 = vst [vmem:[#allocation5 + $0x8] sm:$0xff] %v38
    // Predicated region
    $region10: #{tpu_custom_call.1} parent=1 // pred_check
      _
    $region11: #{tpu_custom_call.1} parent=1 // pred_check_branch
      %42 = sbr.rel (0) target = $region13
    $region12: #{tpu_custom_call.1} parent=1 // pred_region
      %s44 = ssub.s32 256, 256
      %45 = vsyncadd [#allocation4], %s44
      %s47 = sshll.u32 [#allocation5], 4
      %s48 = int_to_ptr.vmem [resolvable:$true] %s47
      %50 = dma.vmem_to_hbm [thread:$0]  %s48, 256, %s1, [#allocation4]
    $region13: #{tpu_custom_call.1} parent=1 // pred_fallthru
      _
    // Predicated region
    $region14: #{tpu_custom_call.1} parent=1 // pred_check
      _
    $region15: #{tpu_custom_call.1} parent=1 // pred_check_branch
      %52 = sbr.rel (0) target = $region17
    $region16: #{tpu_custom_call.1} parent=1 // pred_region
      %53 = dma.done [#allocation4], 256
    $region17: #{tpu_custom_call.1} parent=1 // pred_fallthru
      _
    %54 = vsyncpa [#allocation3], 1
    %55 = vsyncpa [#allocation4], 1

</llo_original>
